<compile_context>
chip_gen: v6e
topology: v6e:2x2x1
jax: 0.10.0
libtpu: 0.0.40
codegen_flags: <defaults>
</compile_context>

<pallas_src>
import jax
import jax.numpy as jnp
from jax.experimental import pallas as pl
from jax.experimental.pallas import tpu as pltpu  # noqa: F401  (TPU backend)


def add_conv1x1_kernel(w_ref, a_ref, b_ref, o_ref):
    # w_ref: (Cout, Cin)   1x1 conv weight (LHS -> no weight transpose needed)
    # a_ref, b_ref: (Cin, M) the two NCHW inputs viewed channels-first-flat
    # o_ref: (Cout, M)     output, reshapes back to (1, Cout, H, W) for free
    x = a_ref[...] + b_ref[...]                     # f32 add (native VPU on all gens)
    o_ref[...] = jnp.dot(
        w_ref[...].astype(jnp.bfloat16),            # bf16 MXU operands,
        x.astype(jnp.bfloat16),                     # f32 accumulation
        preferred_element_type=jnp.float32,
    )


def add_conv1x1(x161_nchw, x146_nchw, weight_oi11):
    """x161, x146: (N, Cin, H, W) float32. weight: (Cout, Cin, 1, 1) float32."""
    N, Cin, H, W = x161_nchw.shape
    Cout = weight_oi11.shape[0]
    M = N * H * W

    if N == 1:
        # Free views — no data movement, no transpose HLOs.
        a2d = x161_nchw.reshape(Cin, M)
        b2d = x146_nchw.reshape(Cin, M)
    else:
        # General-N fallback (not hit by this module's shapes).
        a2d = jnp.moveaxis(x161_nchw, 1, 0).reshape(Cin, M)
        b2d = jnp.moveaxis(x146_nchw, 1, 0).reshape(Cin, M)

    w2d = weight_oi11.reshape(Cout, Cin)            # free view

    out2d = pl.pallas_call(
        add_conv1x1_kernel,
        out_shape=jax.ShapeDtypeStruct((Cout, M), jnp.float32),
        # Single block == full arrays (block-shape == array-dim exception to
        # the (8,128) rule). Everything double-buffered still << VMEM.
        in_specs=[
            pl.BlockSpec((Cout, Cin), lambda: (0, 0)),
            pl.BlockSpec((Cin, M), lambda: (0, 0)),
            pl.BlockSpec((Cin, M), lambda: (0, 0)),
        ],
        out_specs=pl.BlockSpec((Cout, M), lambda: (0, 0)),
    )(w2d, a2d, b2d)

    if N == 1:
        return out2d.reshape(1, Cout, H, W)         # free view
    return jnp.moveaxis(out2d.reshape(Cout, N, H, W), 0, 1)


if __name__ == "__main__":
    key = jax.random.PRNGKey(0)
    k1, k2, k3 = jax.random.split(key, 3)

    # Shapes implied by the module's forward pass.
    N, Cin, H, W, Cout = 1, 160, 14, 14, 640

    x161 = jax.random.normal(k1, (N, Cin, H, W), dtype=jnp.float32)
    x146 = jax.random.normal(k2, (N, Cin, H, W), dtype=jnp.float32)
    # Deterministic synthetic weight (Conv2d(160, 640, 1, bias=False) shape).
    weight = jax.random.normal(k3, (Cout, Cin, 1, 1), dtype=jnp.float32) * 0.05

    out = add_conv1x1(x161, x146, weight)
    out = jax.block_until_ready(out)

    # Pure-JAX f32 reference of the fused add + 1x1 conv (loosened tolerance
    # because the kernel uses bf16 MXU operands with f32 accumulation).
    ref = jnp.einsum("nchw,oc->nohw", x161 + x146, weight.reshape(Cout, Cin))
    assert out.shape == (N, Cout, H, W), out.shape
    assert jnp.allclose(out, ref, atol=5e-2, rtol=5e-2), (
        float(jnp.max(jnp.abs(out - ref)))
    )

    print("KERNEL_OK")
</pallas_src>

<mosaic_0001>
module attributes {stable_mosaic.version = 11 : i64} {
  func.func @add_conv1x1_kernel(%arg0: memref<640x160xf32, #tpu.memory_space<vmem>>, %arg1: memref<160x196xf32, #tpu.memory_space<vmem>>, %arg2: memref<160x196xf32, #tpu.memory_space<vmem>>, %arg3: memref<640x196xf32, #tpu.memory_space<vmem>>) attributes {dimension_semantics = [], scalar_prefetch = 0 : i64, scratch_operands = 0 : i64, tpu.core_type = #tpu.core_type<tc>} {
    %c0 = arith.constant 0 : index
    %c0_0 = arith.constant 0 : index
    %0 = vector.load %arg1[%c0, %c0_0] : memref<160x196xf32, #tpu.memory_space<vmem>>, vector<160x196xf32>
    %c0_1 = arith.constant 0 : index
    %c0_2 = arith.constant 0 : index
    %1 = vector.load %arg2[%c0_1, %c0_2] : memref<160x196xf32, #tpu.memory_space<vmem>>, vector<160x196xf32>
    %2 = arith.addf %0, %1 : vector<160x196xf32>
    %c0_3 = arith.constant 0 : index
    %c0_4 = arith.constant 0 : index
    %3 = vector.load %arg0[%c0_3, %c0_4] : memref<640x160xf32, #tpu.memory_space<vmem>>, vector<640x160xf32>
    %4 = arith.truncf %3 : vector<640x160xf32> to vector<640x160xbf16>
    %5 = arith.truncf %2 : vector<160x196xf32> to vector<160x196xbf16>
    %cst = arith.constant dense<0.000000e+00> : vector<640x196xf32>
    %6 = tpu.matmul %4, %5, %cst {dimension_numbers = #tpu.dot_dimension_numbers<[1], [0], [0], [1], [0, 0, 1, 1], [], []>} : vector<640x160xbf16>, vector<160x196xbf16>, vector<640x196xf32> -> vector<640x196xf32>
    %c0_5 = arith.constant 0 : index
    %c0_6 = arith.constant 0 : index
    %7 = vector.load %arg3[%c0_5, %c0_6] : memref<640x196xf32, #tpu.memory_space<vmem>>, vector<640x196xf32>
    tpu.vector_store %arg3[%c0_5, %c0_6], %6 {strides = array<i32>} : memref<640x196xf32, #tpu.memory_space<vmem>>, vector<640x196xf32>,
    return
  }
}

</mosaic_0001>

<llo_original>
// kernel: tpu_custom_call.1
$region0: #{tpu_custom_call.1}
  #allocation0 [shape = 'u32[]', space=smem, size = 0x4, offset = 0x4, fixed_abs, tag = 'smem constant byte address 0x4 - core index']
  #allocation1 [shape = 'u32[144,128]{1,0:T(1,128)}', space=vmem, size = 0x12000, scoped, tag = 'internal scratch']
  %s0 = inlined_call_operand.vmem [shape: f32[640,160], index: 0, kind: input, shape index: {}]
  %s1 = inlined_call_operand.vmem [shape: f32[160,196], index: 1, kind: input, shape index: {}]
  %s2 = inlined_call_operand.vmem [shape: f32[160,196], index: 2, kind: input, shape index: {}]
  %s3 = inlined_call_operand.vmem [shape: f32[640,196], index: 3, kind: output, shape index: {}]
  %s4 = sld [smem:[#allocation0]]
  $region22: #{tpu_custom_call.1} parent=0
    _
  %s6 = ssub.s32 1, %s4
  %s7 = scalar_select 0, %s6, %s4
  // Predicated region
  $region2: #{tpu_custom_call.1} parent=0 // pred_check
    _
  $region3: #{tpu_custom_call.1} parent=0 // pred_check_branch
    %9 = sbr.rel (0) target = $region5
  $region4: #{tpu_custom_call.1} parent=0 // pred_region
    _
  $region5: #{tpu_custom_call.1} parent=0 // pred_fallthru
    _
  // Predicated region
  $region6: #{tpu_custom_call.1} parent=0 // pred_check
    _
  $region7: #{tpu_custom_call.1} parent=0 // pred_check_branch
    %11 = sbr.rel (0) target = $region9
  $region8: #{tpu_custom_call.1} parent=0 // pred_region
    _
  $region9: #{tpu_custom_call.1} parent=0 // pred_fallthru
    _
  // Predicated region
  $region10: #{tpu_custom_call.1} parent=0 // pred_check
    _
  $region11: #{tpu_custom_call.1} parent=0 // pred_check_branch
    %13 = sbr.rel (0) target = $region13
  $region12: #{tpu_custom_call.1} parent=0 // pred_region
    _
  $region13: #{tpu_custom_call.1} parent=0 // pred_fallthru
    _
  %v15 = vld [vmem:[%s1] sm:$0xff]
  %v16 = vld [vmem:[%s1 + $0x8] sm:$0xff]
  %v17 = vld [vmem:[%s1 + $0x10] sm:$0xff]
  %v18 = vld [vmem:[%s1 + $0x18] sm:$0xff]
  %v19 = vld [vmem:[%s1 + $0x20] sm:$0xff]
  %v20 = vld [vmem:[%s1 + $0x28] sm:$0xff]
  %v21 = vld [vmem:[%s1 + $0x30] sm:$0xff]
  %v22 = vld [vmem:[%s1 + $0x38] sm:$0xff]
  %v23 = vld [vmem:[%s1 + $0x40] sm:$0xff]
  %v24 = vld [vmem:[%s1 + $0x48] sm:$0xff]
  %v25 = vld [vmem:[%s1 + $0x50] sm:$0xff]
  %v26 = vld [vmem:[%s1 + $0x58] sm:$0xff]
  %v27 = vld [vmem:[%s1 + $0x60] sm:$0xff]
  %v28 = vld [vmem:[%s1 + $0x68] sm:$0xff]
  %v29 = vld [vmem:[%s1 + $0x70] sm:$0xff]
  %v30 = vld [vmem:[%s1 + $0x78] sm:$0xff]
  %v31 = vld [vmem:[%s1 + $0x80] sm:$0xff]
  %v32 = vld [vmem:[%s1 + $0x88] sm:$0xff]
  %v33 = vld [vmem:[%s1 + $0x90] sm:$0xff]
  %v34 = vld [vmem:[%s1 + $0x98] sm:$0xff]
  %v35 = vld [vmem:[%s1 + $0xa0] sm:$0xff]
  %v36 = vld [vmem:[%s1 + $0xa8] sm:$0xff]
  %v37 = vld [vmem:[%s1 + $0xb0] sm:$0xff]
  %v38 = vld [vmem:[%s1 + $0xb8] sm:$0xff]
  %v39 = vld [vmem:[%s1 + $0xc0] sm:$0xff]
  %v40 = vld [vmem:[%s1 + $0xc8] sm:$0xff]
  %v41 = vld [vmem:[%s1 + $0xd0] sm:$0xff]
  %v42 = vld [vmem:[%s1 + $0xd8] sm:$0xff]
  %v43 = vld [vmem:[%s1 + $0xe0] sm:$0xff]
  %v44 = vld [vmem:[%s1 + $0xe8] sm:$0xff]
  %v45 = vld [vmem:[%s1 + $0xf0] sm:$0xff]
  %v46 = vld [vmem:[%s1 + $0xf8] sm:$0xff]
  %v47 = vld [vmem:[%s1 + $0x100] sm:$0xff]
  %v48 = vld [vmem:[%s1 + $0x108] sm:$0xff]
  %v49 = vld [vmem:[%s1 + $0x110] sm:$0xff]
  %v50 = vld [vmem:[%s1 + $0x118] sm:$0xff]
  %v51 = vld [vmem:[%s1 + $0x120] sm:$0xff]
  %v52 = vld [vmem:[%s1 + $0x128] sm:$0xff]
  %v53 = vld [vmem:[%s1 + $0x130] sm:$0xff]
  %v54 = vld [vmem:[%s1 + $0x138] sm:$0xff]
  %v55 = vld [vmem:[%s2] sm:$0xff]
  %v56 = vld [vmem:[%s2 + $0x8] sm:$0xff]
  %v57 = vld [vmem:[%s2 + $0x10] sm:$0xff]
  %v58 = vld [vmem:[%s2 + $0x18] sm:$0xff]
  %v59 = vld [vmem:[%s2 + $0x20] sm:$0xff]
  %v60 = vld [vmem:[%s2 + $0x28] sm:$0xff]
  %v61 = vld [vmem:[%s2 + $0x30] sm:$0xff]
  %v62 = vld [vmem:[%s2 + $0x38] sm:$0xff]
  %v63 = vld [vmem:[%s2 + $0x40] sm:$0xff]
  %v64 = vld [vmem:[%s2 + $0x48] sm:$0xff]
  %v65 = vld [vmem:[%s2 + $0x50] sm:$0xff]
  %v66 = vld [vmem:[%s2 + $0x58] sm:$0xff]
  %v67 = vld [vmem:[%s2 + $0x60] sm:$0xff]
  %v68 = vld [vmem:[%s2 + $0x68] sm:$0xff]
  %v69 = vld [vmem:[%s2 + $0x70] sm:$0xff]
  %v70 = vld [vmem:[%s2 + $0x78] sm:$0xff]
  %v71 = vld [vmem:[%s2 + $0x80] sm:$0xff]
  %v72 = vld [vmem:[%s2 + $0x88] sm:$0xff]
  %v73 = vld [vmem:[%s2 + $0x90] sm:$0xff]
  %v74 = vld [vmem:[%s2 + $0x98] sm:$0xff]
  %v75 = vld [vmem:[%s2 + $0xa0] sm:$0xff]
  %v76 = vld [vmem:[%s2 + $0xa8] sm:$0xff]
  %v77 = vld [vmem:[%s2 + $0xb0] sm:$0xff]
  %v78 = vld [vmem:[%s2 + $0xb8] sm:$0xff]
  %v79 = vld [vmem:[%s2 + $0xc0] sm:$0xff]
  %v80 = vld [vmem:[%s2 + $0xc8] sm:$0xff]
  %v81 = vld [vmem:[%s2 + $0xd0] sm:$0xff]
  %v82 = vld [vmem:[%s2 + $0xd8] sm:$0xff]
  %v83 = vld [vmem:[%s2 + $0xe0] sm:$0xff]
  %v84 = vld [vmem:[%s2 + $0xe8] sm:$0xff]
  %v85 = vld [vmem:[%s2 + $0xf0] sm:$0xff]
  %v86 = vld [vmem:[%s2 + $0xf8] sm:$0xff]
  %v87 = vld [vmem:[%s2 + $0x100] sm:$0xff]
  %v88 = vld [vmem:[%s2 + $0x108] sm:$0xff]
  %v89 = vld [vmem:[%s2 + $0x110] sm:$0xff]
  %v90 = vld [vmem:[%s2 + $0x118] sm:$0xff]
  %v91 = vld [vmem:[%s2 + $0x120] sm:$0xff]
  %v92 = vld [vmem:[%s2 + $0x128] sm:$0xff]
  %v93 = vld [vmem:[%s2 + $0x130] sm:$0xff]
  %v94 = vld [vmem:[%s2 + $0x138] sm:$0xff]
  %v95 = vadd.f32 %v15, %v55
  %v96 = vadd.f32 %v16, %v56
  %v97 = vadd.f32 %v17, %v57
  %v98 = vadd.f32 %v18, %v58
  %v99 = vadd.f32 %v19, %v59
  %v100 = vadd.f32 %v20, %v60
  %v101 = vadd.f32 %v21, %v61
  %v102 = vadd.f32 %v22, %v62
  %v103 = vadd.f32 %v23, %v63
  %v104 = vadd.f32 %v24, %v64
  %v105 = vadd.f32 %v25, %v65
  %v106 = vadd.f32 %v26, %v66
  %v107 = vadd.f32 %v27, %v67
  %v108 = vadd.f32 %v28, %v68
  %v109 = vadd.f32 %v29, %v69
  %v110 = vadd.f32 %v30, %v70
  %v111 = vadd.f32 %v31, %v71
  %v112 = vadd.f32 %v32, %v72
  %v113 = vadd.f32 %v33, %v73
  %v114 = vadd.f32 %v34, %v74
  %v115 = vadd.f32 %v35, %v75
  %v116 = vadd.f32 %v36, %v76
  %v117 = vadd.f32 %v37, %v77
  %v118 = vadd.f32 %v38, %v78
  %v119 = vadd.f32 %v39, %v79
  %v120 = vadd.f32 %v40, %v80
  %v121 = vadd.f32 %v41, %v81
  %v122 = vadd.f32 %v42, %v82
  %v123 = vadd.f32 %v43, %v83
  %v124 = vadd.f32 %v44, %v84
  %v125 = vadd.f32 %v45, %v85
  %v126 = vadd.f32 %v46, %v86
  %v127 = vadd.f32 %v47, %v87
  %v128 = vadd.f32 %v48, %v88
  %v129 = vadd.f32 %v49, %v89
  %v130 = vadd.f32 %v50, %v90
  %v131 = vadd.f32 %v51, %v91
  %v132 = vadd.f32 %v52, %v92
  %v133 = vadd.f32 %v53, %v93
  %v134 = vadd.f32 %v54, %v94
  %v135 = vld [vmem:[%s0] sm:$0xff]
  %v136 = vld [vmem:[%s0 + $0x8] sm:$0xff]
  %v137 = vld [vmem:[%s0 + $0x10] sm:$0xff]
  %v138 = vld [vmem:[%s0 + $0x18] sm:$0xff]
  %v139 = vld [vmem:[%s0 + $0x20] sm:$0xff]
  %v140 = vld [vmem:[%s0 + $0x28] sm:$0xff]
  %v141 = vld [vmem:[%s0 + $0x30] sm:$0xff]
  %v142 = vld [vmem:[%s0 + $0x38] sm:$0xff]
  %v143 = vld [vmem:[%s0 + $0x40] sm:$0xff]
  %v144 = vld [vmem:[%s0 + $0x48] sm:$0xff]
  %v145 = vld [vmem:[%s0 + $0x50] sm:$0xff]
  %v146 = vld [vmem:[%s0 + $0x58] sm:$0xff]
  %v147 = vld [vmem:[%s0 + $0x60] sm:$0xff]
  %v148 = vld [vmem:[%s0 + $0x68] sm:$0xff]
  %v149 = vld [vmem:[%s0 + $0x70] sm:$0xff]
  %v150 = vld [vmem:[%s0 + $0x78] sm:$0xff]
  %v151 = vld [vmem:[%s0 + $0x80] sm:$0xff]
  %v152 = vld [vmem:[%s0 + $0x88] sm:$0xff]
  %v153 = vld [vmem:[%s0 + $0x90] sm:$0xff]
  %v154 = vld [vmem:[%s0 + $0x98] sm:$0xff]
  %v155 = vld [vmem:[%s0 + $0xa0] sm:$0xff]
  %v156 = vld [vmem:[%s0 + $0xa8] sm:$0xff]
  %v157 = vld [vmem:[%s0 + $0xb0] sm:$0xff]
  %v158 = vld [vmem:[%s0 + $0xb8] sm:$0xff]
  %v159 = vld [vmem:[%s0 + $0xc0] sm:$0xff]
  %v160 = vld [vmem:[%s0 + $0xc8] sm:$0xff]
  %v161 = vld [vmem:[%s0 + $0xd0] sm:$0xff]
  %v162 = vld [vmem:[%s0 + $0xd8] sm:$0xff]
  %v163 = vld [vmem:[%s0 + $0xe0] sm:$0xff]
  %v164 = vld [vmem:[%s0 + $0xe8] sm:$0xff]
  %v165 = vld [vmem:[%s0 + $0xf0] sm:$0xff]
  %v166 = vld [vmem:[%s0 + $0xf8] sm:$0xff]
  %v167 = vld [vmem:[%s0 + $0x100] sm:$0xff]
  %v168 = vld [vmem:[%s0 + $0x108] sm:$0xff]
  %v169 = vld [vmem:[%s0 + $0x110] sm:$0xff]
  %v170 = vld [vmem:[%s0 + $0x118] sm:$0xff]
  %v171 = vld [vmem:[%s0 + $0x120] sm:$0xff]
  %v172 = vld [vmem:[%s0 + $0x128] sm:$0xff]
  %v173 = vld [vmem:[%s0 + $0x130] sm:$0xff]
  %v174 = vld [vmem:[%s0 + $0x138] sm:$0xff]
  %v175 = vld [vmem:[%s0 + $0x140] sm:$0xff]
  %v176 = vld [vmem:[%s0 + $0x148] sm:$0xff]
  %v177 = vld [vmem:[%s0 + $0x150] sm:$0xff]
  %v178 = vld [vmem:[%s0 + $0x158] sm:$0xff]
  %v179 = vld [vmem:[%s0 + $0x160] sm:$0xff]
  %v180 = vld [vmem:[%s0 + $0x168] sm:$0xff]
  %v181 = vld [vmem:[%s0 + $0x170] sm:$0xff]
  %v182 = vld [vmem:[%s0 + $0x178] sm:$0xff]
  %v183 = vld [vmem:[%s0 + $0x180] sm:$0xff]
  %v184 = vld [vmem:[%s0 + $0x188] sm:$0xff]
  %v185 = vld [vmem:[%s0 + $0x190] sm:$0xff]
  %v186 = vld [vmem:[%s0 + $0x198] sm:$0xff]
  %v187 = vld [vmem:[%s0 + $0x1a0] sm:$0xff]
  %v188 = vld [vmem:[%s0 + $0x1a8] sm:$0xff]
  %v189 = vld [vmem:[%s0 + $0x1b0] sm:$0xff]
  %v190 = vld [vmem:[%s0 + $0x1b8] sm:$0xff]
  %v191 = vld [vmem:[%s0 + $0x1c0] sm:$0xff]
  %v192 = vld [vmem:[%s0 + $0x1c8] sm:$0xff]
  %v193 = vld [vmem:[%s0 + $0x1d0] sm:$0xff]
  %v194 = vld [vmem:[%s0 + $0x1d8] sm:$0xff]
  %v195 = vld [vmem:[%s0 + $0x1e0] sm:$0xff]
  %v196 = vld [vmem:[%s0 + $0x1e8] sm:$0xff]
  %v197 = vld [vmem:[%s0 + $0x1f0] sm:$0xff]
  %v198 = vld [vmem:[%s0 + $0x1f8] sm:$0xff]
  %v199 = vld [vmem:[%s0 + $0x200] sm:$0xff]
  %v200 = vld [vmem:[%s0 + $0x208] sm:$0xff]
  %v201 = vld [vmem:[%s0 + $0x210] sm:$0xff]
  %v202 = vld [vmem:[%s0 + $0x218] sm:$0xff]
  %v203 = vld [vmem:[%s0 + $0x220] sm:$0xff]
  %v204 = vld [vmem:[%s0 + $0x228] sm:$0xff]
  %v205 = vld [vmem:[%s0 + $0x230] sm:$0xff]
  %v206 = vld [vmem:[%s0 + $0x238] sm:$0xff]
  %v207 = vld [vmem:[%s0 + $0x240] sm:$0xff]
  %v208 = vld [vmem:[%s0 + $0x248] sm:$0xff]
  %v209 = vld [vmem:[%s0 + $0x250] sm:$0xff]
  %v210 = vld [vmem:[%s0 + $0x258] sm:$0xff]
  %v211 = vld [vmem:[%s0 + $0x260] sm:$0xff]
  %v212 = vld [vmem:[%s0 + $0x268] sm:$0xff]
  %v213 = vld [vmem:[%s0 + $0x270] sm:$0xff]
  %v214 = vld [vmem:[%s0 + $0x278] sm:$0xff]
  %v215 = vld [vmem:[%s0 + $0x280] sm:$0xff]
  %v216 = vld [vmem:[%s0 + $0x288] sm:$0xff]
  %v217 = vld [vmem:[%s0 + $0x290] sm:$0xff]
  %v218 = vld [vmem:[%s0 + $0x298] sm:$0xff]
  %v219 = vld [vmem:[%s0 + $0x2a0] sm:$0xff]
  %v220 = vld [vmem:[%s0 + $0x2a8] sm:$0xff]
  %v221 = vld [vmem:[%s0 + $0x2b0] sm:$0xff]
  %v222 = vld [vmem:[%s0 + $0x2b8] sm:$0xff]
  %v223 = vld [vmem:[%s0 + $0x2c0] sm:$0xff]
  %v224 = vld [vmem:[%s0 + $0x2c8] sm:$0xff]
  %v225 = vld [vmem:[%s0 + $0x2d0] sm:$0xff]
  %v226 = vld [vmem:[%s0 + $0x2d8] sm:$0xff]
  %v227 = vld [vmem:[%s0 + $0x2e0] sm:$0xff]
  %v228 = vld [vmem:[%s0 + $0x2e8] sm:$0xff]
  %v229 = vld [vmem:[%s0 + $0x2f0] sm:$0xff]
  %v230 = vld [vmem:[%s0 + $0x2f8] sm:$0xff]
  %v231 = vld [vmem:[%s0 + $0x300] sm:$0xff]
  %v232 = vld [vmem:[%s0 + $0x308] sm:$0xff]
  %v233 = vld [vmem:[%s0 + $0x310] sm:$0xff]
  %v234 = vld [vmem:[%s0 + $0x318] sm:$0xff]
  %v235 = vld [vmem:[%s0 + $0x320] sm:$0xff]
  %v236 = vld [vmem:[%s0 + $0x328] sm:$0xff]
  %v237 = vld [vmem:[%s0 + $0x330] sm:$0xff]
  %v238 = vld [vmem:[%s0 + $0x338] sm:$0xff]
  %v239 = vld [vmem:[%s0 + $0x340] sm:$0xff]
  %v240 = vld [vmem:[%s0 + $0x348] sm:$0xff]
  %v241 = vld [vmem:[%s0 + $0x350] sm:$0xff]
  %v242 = vld [vmem:[%s0 + $0x358] sm:$0xff]
  %v243 = vld [vmem:[%s0 + $0x360] sm:$0xff]
  %v244 = vld [vmem:[%s0 + $0x368] sm:$0xff]
  %v245 = vld [vmem:[%s0 + $0x370] sm:$0xff]
  %v246 = vld [vmem:[%s0 + $0x378] sm:$0xff]
  %v247 = vld [vmem:[%s0 + $0x380] sm:$0xff]
  %v248 = vld [vmem:[%s0 + $0x388] sm:$0xff]
  %v249 = vld [vmem:[%s0 + $0x390] sm:$0xff]
  %v250 = vld [vmem:[%s0 + $0x398] sm:$0xff]
  %v251 = vld [vmem:[%s0 + $0x3a0] sm:$0xff]
  %v252 = vld [vmem:[%s0 + $0x3a8] sm:$0xff]
  %v253 = vld [vmem:[%s0 + $0x3b0] sm:$0xff]
  %v254 = vld [vmem:[%s0 + $0x3b8] sm:$0xff]
  %v255 = vld [vmem:[%s0 + $0x3c0] sm:$0xff]
  %v256 = vld [vmem:[%s0 + $0x3c8] sm:$0xff]
  %v257 = vld [vmem:[%s0 + $0x3d0] sm:$0xff]
  %v258 = vld [vmem:[%s0 + $0x3d8] sm:$0xff]
  %v259 = vld [vmem:[%s0 + $0x3e0] sm:$0xff]
  %v260 = vld [vmem:[%s0 + $0x3e8] sm:$0xff]
  %v261 = vld [vmem:[%s0 + $0x3f0] sm:$0xff]
  %v262 = vld [vmem:[%s0 + $0x3f8] sm:$0xff]
  %v263 = vld [vmem:[%s0 + $0x400] sm:$0xff]
  %v264 = vld [vmem:[%s0 + $0x408] sm:$0xff]
  %v265 = vld [vmem:[%s0 + $0x410] sm:$0xff]
  %v266 = vld [vmem:[%s0 + $0x418] sm:$0xff]
  %v267 = vld [vmem:[%s0 + $0x420] sm:$0xff]
  %v268 = vld [vmem:[%s0 + $0x428] sm:$0xff]
  %v269 = vld [vmem:[%s0 + $0x430] sm:$0xff]
  %v270 = vld [vmem:[%s0 + $0x438] sm:$0xff]
  %v271 = vld [vmem:[%s0 + $0x440] sm:$0xff]
  %v272 = vld [vmem:[%s0 + $0x448] sm:$0xff]
  %v273 = vld [vmem:[%s0 + $0x450] sm:$0xff]
  %v274 = vld [vmem:[%s0 + $0x458] sm:$0xff]
  %v275 = vld [vmem:[%s0 + $0x460] sm:$0xff]
  %v276 = vld [vmem:[%s0 + $0x468] sm:$0xff]
  %v277 = vld [vmem:[%s0 + $0x470] sm:$0xff]
  %v278 = vld [vmem:[%s0 + $0x478] sm:$0xff]
  %v279 = vld [vmem:[%s0 + $0x480] sm:$0xff]
  %v280 = vld [vmem:[%s0 + $0x488] sm:$0xff]
  %v281 = vld [vmem:[%s0 + $0x490] sm:$0xff]
  %v282 = vld [vmem:[%s0 + $0x498] sm:$0xff]
  %v283 = vld [vmem:[%s0 + $0x4a0] sm:$0xff]
  %v284 = vld [vmem:[%s0 + $0x4a8] sm:$0xff]
  %v285 = vld [vmem:[%s0 + $0x4b0] sm:$0xff]
  %v286 = vld [vmem:[%s0 + $0x4b8] sm:$0xff]
  %v287 = vld [vmem:[%s0 + $0x4c0] sm:$0xff]
  %v288 = vld [vmem:[%s0 + $0x4c8] sm:$0xff]
  %v289 = vld [vmem:[%s0 + $0x4d0] sm:$0xff]
  %v290 = vld [vmem:[%s0 + $0x4d8] sm:$0xff]
  %v291 = vld [vmem:[%s0 + $0x4e0] sm:$0xff]
  %v292 = vld [vmem:[%s0 + $0x4e8] sm:$0xff]
  %v293 = vld [vmem:[%s0 + $0x4f0] sm:$0xff]
  %v294 = vld [vmem:[%s0 + $0x4f8] sm:$0xff]
  %v295 = vpack.c.bf16 %v137, %v135
  %v296 = vpack.c.bf16 %v138, %v136
  %v297 = vpack.c.bf16 %v141, %v139
  %v298 = vpack.c.bf16 %v142, %v140
  %v299 = vpack.c.bf16 %v145, %v143
  %v300 = vpack.c.bf16 %v146, %v144
  %v301 = vpack.c.bf16 %v149, %v147
  %v302 = vpack.c.bf16 %v150, %v148
  %v303 = vpack.c.bf16 %v153, %v151
  %v304 = vpack.c.bf16 %v154, %v152
  %v305 = vpack.c.bf16 %v157, %v155
  %v306 = vpack.c.bf16 %v158, %v156
  %v307 = vpack.c.bf16 %v161, %v159
  %v308 = vpack.c.bf16 %v162, %v160
  %v309 = vpack.c.bf16 %v165, %v163
  %v310 = vpack.c.bf16 %v166, %v164
  %v311 = vpack.c.bf16 %v169, %v167
  %v312 = vpack.c.bf16 %v170, %v168
  %v313 = vpack.c.bf16 %v173, %v171
  %v314 = vpack.c.bf16 %v174, %v172
  %v315 = vpack.c.bf16 %v177, %v175
  %v316 = vpack.c.bf16 %v178, %v176
  %v317 = vpack.c.bf16 %v181, %v179
  %v318 = vpack.c.bf16 %v182, %v180
  %v319 = vpack.c.bf16 %v185, %v183
  %v320 = vpack.c.bf16 %v186, %v184
  %v321 = vpack.c.bf16 %v189, %v187
  %v322 = vpack.c.bf16 %v190, %v188
  %v323 = vpack.c.bf16 %v193, %v191
  %v324 = vpack.c.bf16 %v194, %v192
  %v325 = vpack.c.bf16 %v197, %v195
  %v326 = vpack.c.bf16 %v198, %v196
  %v327 = vpack.c.bf16 %v201, %v199
  %v328 = vpack.c.bf16 %v202, %v200
  %v329 = vpack.c.bf16 %v205, %v203
  %v330 = vpack.c.bf16 %v206, %v204
  %v331 = vpack.c.bf16 %v209, %v207
  %v332 = vpack.c.bf16 %v210, %v208
  %v333 = vpack.c.bf16 %v213, %v211
  %v334 = vpack.c.bf16 %v214, %v212
  %v335 = vpack.c.bf16 %v217, %v215
  %v336 = vpack.c.bf16 %v218, %v216
  %v337 = vpack.c.bf16 %v221, %v219
  %v338 = vpack.c.bf16 %v222, %v220
  %v339 = vpack.c.bf16 %v225, %v223
  %v340 = vpack.c.bf16 %v226, %v224
  %v341 = vpack.c.bf16 %v229, %v227
  %v342 = vpack.c.bf16 %v230, %v228
  %v343 = vpack.c.bf16 %v233, %v231
  %v344 = vpack.c.bf16 %v234, %v232
  %v345 = vpack.c.bf16 %v237, %v235
  %v346 = vpack.c.bf16 %v238, %v236
  %v347 = vpack.c.bf16 %v241, %v239
  %v348 = vpack.c.bf16 %v242, %v240
  %v349 = vpack.c.bf16 %v245, %v243
  %v350 = vpack.c.bf16 %v246, %v244
  %v351 = vpack.c.bf16 %v249, %v247
  %v352 = vpack.c.bf16 %v250, %v248
  %v353 = vpack.c.bf16 %v253, %v251
  %v354 = vpack.c.bf16 %v254, %v252
  %v355 = vpack.c.bf16 %v257, %v255
  %v356 = vpack.c.bf16 %v258, %v256
  %v357 = vpack.c.bf16 %v261, %v259
  %v358 = vpack.c.bf16 %v262, %v260
  %v359 = vpack.c.bf16 %v265, %v263
  %v360 = vpack.c.bf16 %v266, %v264
  %v361 = vpack.c.bf16 %v269, %v267
  %v362 = vpack.c.bf16 %v270, %v268
  %v363 = vpack.c.bf16 %v273, %v271
  %v364 = vpack.c.bf16 %v274, %v272
  %v365 = vpack.c.bf16 %v277, %v275
  %v366 = vpack.c.bf16 %v278, %v276
  %v367 = vpack.c.bf16 %v281, %v279
  %v368 = vpack.c.bf16 %v282, %v280
  %v369 = vpack.c.bf16 %v285, %v283
  %v370 = vpack.c.bf16 %v286, %v284
  %v371 = vpack.c.bf16 %v289, %v287
  %v372 = vpack.c.bf16 %v290, %v288
  %v373 = vpack.c.bf16 %v293, %v291
  %v374 = vpack.c.bf16 %v294, %v292
  %v375 = vpack.c.bf16 %v97, %v95
  %v376 = vpack.c.bf16 %v98, %v96
  %v377 = vpack.c.bf16 %v101, %v99
  %v378 = vpack.c.bf16 %v102, %v100
  %v379 = vpack.c.bf16 %v105, %v103
  %v380 = vpack.c.bf16 %v106, %v104
  %v381 = vpack.c.bf16 %v109, %v107
  %v382 = vpack.c.bf16 %v110, %v108
  %v383 = vpack.c.bf16 %v113, %v111
  %v384 = vpack.c.bf16 %v114, %v112
  %v385 = vpack.c.bf16 %v117, %v115
  %v386 = vpack.c.bf16 %v118, %v116
  %v387 = vpack.c.bf16 %v121, %v119
  %v388 = vpack.c.bf16 %v122, %v120
  %v389 = vpack.c.bf16 %v125, %v123
  %v390 = vpack.c.bf16 %v126, %v124
  %v391 = vpack.c.bf16 %v129, %v127
  %v392 = vpack.c.bf16 %v130, %v128
  %v393 = vpack.c.bf16 %v133, %v131
  %v394 = vpack.c.bf16 %v134, %v132
  %vm395 = vcmask 261120
  %v397 = vsel %vm395, %v296, 0
  %v400 = vsel %vm395, %v298, 0
  %v403 = vsel %vm395, %v300, 0
  %v406 = vsel %vm395, %v302, 0
  %v409 = vsel %vm395, %v304, 0
  %v412 = vsel %vm395, %v306, 0
  %v415 = vsel %vm395, %v308, 0
  %v418 = vsel %vm395, %v310, 0
  %v421 = vsel %vm395, %v312, 0
  %v424 = vsel %vm395, %v314, 0
  %v427 = vsel %vm395, %v316, 0
  %v430 = vsel %vm395, %v318, 0
  %v433 = vsel %vm395, %v320, 0
  %v436 = vsel %vm395, %v322, 0
  %v439 = vsel %vm395, %v324, 0
  %v442 = vsel %vm395, %v326, 0
  %v445 = vsel %vm395, %v328, 0
  %v448 = vsel %vm395, %v330, 0
  %v451 = vsel %vm395, %v332, 0
  %v454 = vsel %vm395, %v334, 0
  %v457 = vsel %vm395, %v336, 0
  %v460 = vsel %vm395, %v338, 0
  %v463 = vsel %vm395, %v340, 0
  %v466 = vsel %vm395, %v342, 0
  %v469 = vsel %vm395, %v344, 0
  %v472 = vsel %vm395, %v346, 0
  %v475 = vsel %vm395, %v348, 0
  %v478 = vsel %vm395, %v350, 0
  %v481 = vsel %vm395, %v352, 0
  %v484 = vsel %vm395, %v354, 0
  %v487 = vsel %vm395, %v356, 0
  %v490 = vsel %vm395, %v358, 0
  %v493 = vsel %vm395, %v360, 0
  %v496 = vsel %vm395, %v362, 0
  %v499 = vsel %vm395, %v364, 0
  %v502 = vsel %vm395, %v366, 0
  %v505 = vsel %vm395, %v368, 0
  %v508 = vsel %vm395, %v370, 0
  %v511 = vsel %vm395, %v372, 0
  %v514 = vsel %vm395, %v374, 0
  %516 = vmatprep.subr.bf16.mxu0 %v390
  %517 = vmatpush1.bf16.msra.mxu0 %v389
  %518 = vmatprep.subr.bf16.mxu0 %v388
  %519 = vmatpush1.bf16.msra.mxu0 %v387
  %520 = vmatprep.subr.bf16.mxu0 %v386
  %521 = vmatpush1.bf16.msra.mxu0 %v385
  %522 = vmatprep.subr.bf16.mxu0 %v384
  %523 = vmatpush1.bf16.msra.mxu0 %v383
  %524 = vmatprep.subr.bf16.mxu0 %v382
  %525 = vmatpush1.bf16.msra.mxu0 %v381
  %526 = vmatprep.subr.bf16.mxu0 %v380
  %527 = vmatpush1.bf16.msra.mxu0 %v379
  %528 = vmatprep.subr.bf16.mxu0 %v378
  %529 = vmatpush1.bf16.msra.mxu0 %v377
  %530 = vmatprep.subr.bf16.mxu0 %v376
  %531 = vmatpush1.bf16.msra.mxu0 %v375
  %532 = vmatprep.subr.bf16.mxu0 0
  %533 = vmatpush2.bf16.msra.mxu0 0
  %534 = vmatprep.subr.bf16.mxu0 0
  %535 = vmatpush2.bf16.msra.mxu0 0
  %536 = vmatprep.subr.bf16.mxu0 0
  %537 = vmatpush2.bf16.msra.mxu0 0
  %538 = vmatprep.subr.bf16.mxu0 0
  %539 = vmatpush2.bf16.msra.mxu0 0
  %540 = vmatprep.subr.bf16.mxu0 0
  %541 = vmatpush2.bf16.msra.mxu0 0
  %542 = vmatprep.subr.bf16.mxu0 0
  %543 = vmatpush2.bf16.msra.mxu0 0
  %544 = vmatprep.subr.bf16.mxu0 %v394
  %545 = vmatpush2.bf16.msra.mxu0 %v393
  %546 = vmatprep.subr.bf16.mxu0 %v392
  %547 = vmatpush2.bf16.msra.mxu0 %v391
  %548 = vmatprep.mubr.bf16.mxu0 %v397
  %549 = vmatmul.mubr.bf16.gmra.mxu0 %v295
  %v550 = vpop.f32.mrf.mxu0
  %v551 = vadd.f32 0.0, %v550
  %v552 = vpop.f32.mrf.mxu0
  %v553 = vadd.f32 0.0, %v552
  %v554 = vpop.f32.mrf.mxu0
  %v555 = vadd.f32 0.0, %v554
  %v556 = vpop.f32.mrf.mxu0
  %v557 = vadd.f32 0.0, %v556
  %558 = vmatprep.mubr.bf16.mxu0 %v400
  %559 = vmatmul.mubr.bf16.gmra.mxu0 %v297
  %v560 = vpop.f32.mrf.mxu0
  %v561 = vadd.f32 0.0, %v560
  %v562 = vpop.f32.mrf.mxu0
  %v563 = vadd.f32 0.0, %v562
  %v564 = vpop.f32.mrf.mxu0
  %v565 = vadd.f32 0.0, %v564
  %v566 = vpop.f32.mrf.mxu0
  %v567 = vadd.f32 0.0, %v566
  %568 = vmatprep.mubr.bf16.mxu0 %v403
  %569 = vmatmul.mubr.bf16.gmra.mxu0 %v299
  %v570 = vpop.f32.mrf.mxu0
  %v571 = vadd.f32 0.0, %v570
  %v572 = vpop.f32.mrf.mxu0
  %v573 = vadd.f32 0.0, %v572
  %v574 = vpop.f32.mrf.mxu0
  %v575 = vadd.f32 0.0, %v574
  %v576 = vpop.f32.mrf.mxu0
  %v577 = vadd.f32 0.0, %v576
  %578 = vmatprep.mubr.bf16.mxu0 %v406
  %579 = vmatmul.mubr.bf16.gmra.mxu0 %v301
  %v580 = vpop.f32.mrf.mxu0
  %v581 = vadd.f32 0.0, %v580
  %v582 = vpop.f32.mrf.mxu0
  %v583 = vadd.f32 0.0, %v582
  %v584 = vpop.f32.mrf.mxu0
  %v585 = vadd.f32 0.0, %v584
  %v586 = vpop.f32.mrf.mxu0
  %v587 = vadd.f32 0.0, %v586
  %588 = vmatprep.mubr.bf16.mxu0 %v409
  %589 = vmatmul.mubr.bf16.gmra.mxu0 %v303
  %v590 = vpop.f32.mrf.mxu0
  %v591 = vadd.f32 0.0, %v590
  %v592 = vpop.f32.mrf.mxu0
  %v593 = vadd.f32 0.0, %v592
  %v594 = vpop.f32.mrf.mxu0
  %v595 = vadd.f32 0.0, %v594
  %v596 = vpop.f32.mrf.mxu0
  %v597 = vadd.f32 0.0, %v596
  %598 = vmatprep.mubr.bf16.mxu0 %v412
  %599 = vmatmul.mubr.bf16.gmra.mxu0 %v305
  %v600 = vpop.f32.mrf.mxu0
  %v601 = vadd.f32 0.0, %v600
  %v602 = vpop.f32.mrf.mxu0
  %v603 = vadd.f32 0.0, %v602
  %v604 = vpop.f32.mrf.mxu0
  %v605 = vadd.f32 0.0, %v604
  %v606 = vpop.f32.mrf.mxu0
  %v607 = vadd.f32 0.0, %v606
  %608 = vmatprep.mubr.bf16.mxu0 %v415
  %609 = vmatmul.mubr.bf16.gmra.mxu0 %v307
  %v610 = vpop.f32.mrf.mxu0
  %v611 = vadd.f32 0.0, %v610
  %v612 = vpop.f32.mrf.mxu0
  %v613 = vadd.f32 0.0, %v612
  %v614 = vpop.f32.mrf.mxu0
  %v615 = vadd.f32 0.0, %v614
  %v616 = vpop.f32.mrf.mxu0
  %v617 = vadd.f32 0.0, %v616
  %618 = vmatprep.mubr.bf16.mxu0 %v418
  %619 = vmatmul.mubr.bf16.gmra.mxu0 %v309
  %v620 = vpop.f32.mrf.mxu0
  %v621 = vadd.f32 0.0, %v620
  %v622 = vpop.f32.mrf.mxu0
  %v623 = vadd.f32 0.0, %v622
  %v624 = vpop.f32.mrf.mxu0
  %v625 = vadd.f32 0.0, %v624
  %v626 = vpop.f32.mrf.mxu0
  %v627 = vadd.f32 0.0, %v626
  %628 = vmatprep.mubr.bf16.mxu0 %v421
  %629 = vmatmul.mubr.bf16.gmra.mxu0 %v311
  %v630 = vpop.f32.mrf.mxu0
  %v631 = vadd.f32 0.0, %v630
  %v632 = vpop.f32.mrf.mxu0
  %v633 = vadd.f32 0.0, %v632
  %v634 = vpop.f32.mrf.mxu0
  %v635 = vadd.f32 0.0, %v634
  %v636 = vpop.f32.mrf.mxu0
  %v637 = vadd.f32 0.0, %v636
  %638 = vmatprep.mubr.bf16.mxu0 %v424
  %639 = vmatmul.mubr.bf16.gmra.mxu0 %v313
  %v640 = vpop.f32.mrf.mxu0
  %v641 = vadd.f32 0.0, %v640
  %v642 = vpop.f32.mrf.mxu0
  %v643 = vadd.f32 0.0, %v642
  %v644 = vpop.f32.mrf.mxu0
  %v645 = vadd.f32 0.0, %v644
  %v646 = vpop.f32.mrf.mxu0
  %v647 = vadd.f32 0.0, %v646
  %648 = vmatprep.mubr.bf16.mxu0 %v427
  %649 = vmatmul.mubr.bf16.gmra.mxu0 %v315
  %v650 = vpop.f32.mrf.mxu0
  %v651 = vadd.f32 0.0, %v650
  %v652 = vpop.f32.mrf.mxu0
  %v653 = vadd.f32 0.0, %v652
  %v654 = vpop.f32.mrf.mxu0
  %v655 = vadd.f32 0.0, %v654
  %v656 = vpop.f32.mrf.mxu0
  %v657 = vadd.f32 0.0, %v656
  %658 = vmatprep.mubr.bf16.mxu0 %v430
  %659 = vmatmul.mubr.bf16.gmra.mxu0 %v317
  %v660 = vpop.f32.mrf.mxu0
  %v661 = vadd.f32 0.0, %v660
  %v662 = vpop.f32.mrf.mxu0
  %v663 = vadd.f32 0.0, %v662
  %v664 = vpop.f32.mrf.mxu0
  %v665 = vadd.f32 0.0, %v664
  %v666 = vpop.f32.mrf.mxu0
  %v667 = vadd.f32 0.0, %v666
  %668 = vmatprep.mubr.bf16.mxu0 %v433
  %669 = vmatmul.mubr.bf16.gmra.mxu0 %v319
  %v670 = vpop.f32.mrf.mxu0
  %v671 = vadd.f32 0.0, %v670
  %v672 = vpop.f32.mrf.mxu0
  %v673 = vadd.f32 0.0, %v672
  %v674 = vpop.f32.mrf.mxu0
  %v675 = vadd.f32 0.0, %v674
  %v676 = vpop.f32.mrf.mxu0
  %v677 = vadd.f32 0.0, %v676
  %678 = vmatprep.mubr.bf16.mxu0 %v436
  %679 = vmatmul.mubr.bf16.gmra.mxu0 %v321
  %v680 = vpop.f32.mrf.mxu0
  %v681 = vadd.f32 0.0, %v680
  %v682 = vpop.f32.mrf.mxu0
  %v683 = vadd.f32 0.0, %v682
  %v684 = vpop.f32.mrf.mxu0
  %v685 = vadd.f32 0.0, %v684
  %v686 = vpop.f32.mrf.mxu0
  %v687 = vadd.f32 0.0, %v686
  %688 = vmatprep.mubr.bf16.mxu0 %v439
  %689 = vmatmul.mubr.bf16.gmra.mxu0 %v323
  %v690 = vpop.f32.mrf.mxu0
  %v691 = vadd.f32 0.0, %v690
  %v692 = vpop.f32.mrf.mxu0
  %v693 = vadd.f32 0.0, %v692
  %v694 = vpop.f32.mrf.mxu0
  %v695 = vadd.f32 0.0, %v694
  %v696 = vpop.f32.mrf.mxu0
  %v697 = vadd.f32 0.0, %v696
  %698 = vmatprep.mubr.bf16.mxu0 %v442
  %699 = vmatmul.mubr.bf16.gmra.mxu0 %v325
  %v700 = vpop.f32.mrf.mxu0
  %v701 = vadd.f32 0.0, %v700
  %v702 = vpop.f32.mrf.mxu0
  %v703 = vadd.f32 0.0, %v702
  %v704 = vpop.f32.mrf.mxu0
  %v705 = vadd.f32 0.0, %v704
  %v706 = vpop.f32.mrf.mxu0
  %v707 = vadd.f32 0.0, %v706
  %708 = vmatprep.mubr.bf16.mxu0 %v445
  %709 = vmatmul.mubr.bf16.gmra.mxu0 %v327
  %v710 = vpop.f32.mrf.mxu0
  %v711 = vadd.f32 0.0, %v710
  %v712 = vpop.f32.mrf.mxu0
  %v713 = vadd.f32 0.0, %v712
  %v714 = vpop.f32.mrf.mxu0
  %v715 = vadd.f32 0.0, %v714
  %v716 = vpop.f32.mrf.mxu0
  %v717 = vadd.f32 0.0, %v716
  %718 = vmatprep.mubr.bf16.mxu0 %v448
  %719 = vmatmul.mubr.bf16.gmra.mxu0 %v329
  %v720 = vpop.f32.mrf.mxu0
  %v721 = vadd.f32 0.0, %v720
  %v722 = vpop.f32.mrf.mxu0
  %v723 = vadd.f32 0.0, %v722
  %v724 = vpop.f32.mrf.mxu0
  %v725 = vadd.f32 0.0, %v724
  %v726 = vpop.f32.mrf.mxu0
  %v727 = vadd.f32 0.0, %v726
  %728 = vmatprep.mubr.bf16.mxu0 %v451
  %729 = vmatmul.mubr.bf16.gmra.mxu0 %v331
  %v730 = vpop.f32.mrf.mxu0
  %v731 = vadd.f32 0.0, %v730
  %v732 = vpop.f32.mrf.mxu0
  %v733 = vadd.f32 0.0, %v732
  %v734 = vpop.f32.mrf.mxu0
  %v735 = vadd.f32 0.0, %v734
  %v736 = vpop.f32.mrf.mxu0
  %v737 = vadd.f32 0.0, %v736
  %738 = vmatprep.mubr.bf16.mxu0 %v454
  %739 = vmatmul.mubr.bf16.gmra.mxu0 %v333
  %v740 = vpop.f32.mrf.mxu0
  %v741 = vadd.f32 0.0, %v740
  %v742 = vpop.f32.mrf.mxu0
  %v743 = vadd.f32 0.0, %v742
  %v744 = vpop.f32.mrf.mxu0
  %v745 = vadd.f32 0.0, %v744
  %v746 = vpop.f32.mrf.mxu0
  %v747 = vadd.f32 0.0, %v746
  %748 = vmatprep.mubr.bf16.mxu0 %v457
  %749 = vmatmul.mubr.bf16.gmra.mxu0 %v335
  %v750 = vpop.f32.mrf.mxu0
  %v751 = vadd.f32 0.0, %v750
  %v752 = vpop.f32.mrf.mxu0
  %v753 = vadd.f32 0.0, %v752
  %v754 = vpop.f32.mrf.mxu0
  %v755 = vadd.f32 0.0, %v754
  %v756 = vpop.f32.mrf.mxu0
  %v757 = vadd.f32 0.0, %v756
  %758 = vmatprep.mubr.bf16.mxu0 %v460
  %759 = vmatmul.mubr.bf16.gmra.mxu0 %v337
  %v760 = vpop.f32.mrf.mxu0
  %v761 = vadd.f32 0.0, %v760
  %v762 = vpop.f32.mrf.mxu0
  %v763 = vadd.f32 0.0, %v762
  %v764 = vpop.f32.mrf.mxu0
  %v765 = vadd.f32 0.0, %v764
  %v766 = vpop.f32.mrf.mxu0
  %v767 = vadd.f32 0.0, %v766
  %768 = vmatprep.mubr.bf16.mxu0 %v463
  %769 = vmatmul.mubr.bf16.gmra.mxu0 %v339
  %v770 = vpop.f32.mrf.mxu0
  %v771 = vadd.f32 0.0, %v770
  %v772 = vpop.f32.mrf.mxu0
  %v773 = vadd.f32 0.0, %v772
  %v774 = vpop.f32.mrf.mxu0
  %v775 = vadd.f32 0.0, %v774
  %v776 = vpop.f32.mrf.mxu0
  %v777 = vadd.f32 0.0, %v776
  %778 = vmatprep.mubr.bf16.mxu0 %v466
  %779 = vmatmul.mubr.bf16.gmra.mxu0 %v341
  %v780 = vpop.f32.mrf.mxu0
  %v781 = vadd.f32 0.0, %v780
  %v782 = vpop.f32.mrf.mxu0
  %v783 = vadd.f32 0.0, %v782
  %v784 = vpop.f32.mrf.mxu0
  %v785 = vadd.f32 0.0, %v784
  %v786 = vpop.f32.mrf.mxu0
  %v787 = vadd.f32 0.0, %v786
  %788 = vmatprep.mubr.bf16.mxu0 %v469
  %789 = vmatmul.mubr.bf16.gmra.mxu0 %v343
  %v790 = vpop.f32.mrf.mxu0
  %v791 = vadd.f32 0.0, %v790
  %v792 = vpop.f32.mrf.mxu0
  %v793 = vadd.f32 0.0, %v792
  %v794 = vpop.f32.mrf.mxu0
  %v795 = vadd.f32 0.0, %v794
  %v796 = vpop.f32.mrf.mxu0
  %v797 = vadd.f32 0.0, %v796
  %798 = vmatprep.mubr.bf16.mxu0 %v472
  %799 = vmatmul.mubr.bf16.gmra.mxu0 %v345
  %v800 = vpop.f32.mrf.mxu0
  %v801 = vadd.f32 0.0, %v800
  %v802 = vpop.f32.mrf.mxu0
  %v803 = vadd.f32 0.0, %v802
  %v804 = vpop.f32.mrf.mxu0
  %v805 = vadd.f32 0.0, %v804
  %v806 = vpop.f32.mrf.mxu0
  %v807 = vadd.f32 0.0, %v806
  %808 = vmatprep.mubr.bf16.mxu0 %v475
  %809 = vmatmul.mubr.bf16.gmra.mxu0 %v347
  %v810 = vpop.f32.mrf.mxu0
  %v811 = vadd.f32 0.0, %v810
  %v812 = vpop.f32.mrf.mxu0
  %v813 = vadd.f32 0.0, %v812
  %v814 = vpop.f32.mrf.mxu0
  %v815 = vadd.f32 0.0, %v814
  %v816 = vpop.f32.mrf.mxu0
  %v817 = vadd.f32 0.0, %v816
  %818 = vmatprep.mubr.bf16.mxu0 %v478
  %819 = vmatmul.mubr.bf16.gmra.mxu0 %v349
  %v820 = vpop.f32.mrf.mxu0
  %v821 = vadd.f32 0.0, %v820
  %v822 = vpop.f32.mrf.mxu0
  %v823 = vadd.f32 0.0, %v822
  %v824 = vpop.f32.mrf.mxu0
  %v825 = vadd.f32 0.0, %v824
  %v826 = vpop.f32.mrf.mxu0
  %v827 = vadd.f32 0.0, %v826
  %828 = vmatprep.mubr.bf16.mxu0 %v481
  %829 = vmatmul.mubr.bf16.gmra.mxu0 %v351
  %v830 = vpop.f32.mrf.mxu0
  %v831 = vadd.f32 0.0, %v830
  %v832 = vpop.f32.mrf.mxu0
  %v833 = vadd.f32 0.0, %v832
  %v834 = vpop.f32.mrf.mxu0
  %v835 = vadd.f32 0.0, %v834
  %v836 = vpop.f32.mrf.mxu0
  %v837 = vadd.f32 0.0, %v836
  %838 = vmatprep.mubr.bf16.mxu0 %v484
  %839 = vmatmul.mubr.bf16.gmra.mxu0 %v353
  %v840 = vpop.f32.mrf.mxu0
  %v841 = vadd.f32 0.0, %v840
  %v842 = vpop.f32.mrf.mxu0
  %v843 = vadd.f32 0.0, %v842
  %v844 = vpop.f32.mrf.mxu0
  %v845 = vadd.f32 0.0, %v844
  %v846 = vpop.f32.mrf.mxu0
  %v847 = vadd.f32 0.0, %v846
  %848 = vmatprep.mubr.bf16.mxu0 %v487
  %849 = vmatmul.mubr.bf16.gmra.mxu0 %v355
  %v850 = vpop.f32.mrf.mxu0
  %v851 = vadd.f32 0.0, %v850
  %v852 = vpop.f32.mrf.mxu0
  %v853 = vadd.f32 0.0, %v852
  %v854 = vpop.f32.mrf.mxu0
  %v855 = vadd.f32 0.0, %v854
  %v856 = vpop.f32.mrf.mxu0
  %v857 = vadd.f32 0.0, %v856
  %858 = vmatprep.mubr.bf16.mxu0 %v490
  %859 = vmatmul.mubr.bf16.gmra.mxu0 %v357
  %v860 = vpop.f32.mrf.mxu0
  %v861 = vadd.f32 0.0, %v860
  %v862 = vpop.f32.mrf.mxu0
  %v863 = vadd.f32 0.0, %v862
  %v864 = vpop.f32.mrf.mxu0
  %v865 = vadd.f32 0.0, %v864
  %v866 = vpop.f32.mrf.mxu0
  %v867 = vadd.f32 0.0, %v866
  %868 = vmatprep.mubr.bf16.mxu0 %v493
  %869 = vmatmul.mubr.bf16.gmra.mxu0 %v359
  %v870 = vpop.f32.mrf.mxu0
  %v871 = vadd.f32 0.0, %v870
  %v872 = vpop.f32.mrf.mxu0
  %v873 = vadd.f32 0.0, %v872
  %v874 = vpop.f32.mrf.mxu0
  %v875 = vadd.f32 0.0, %v874
  %v876 = vpop.f32.mrf.mxu0
  %v877 = vadd.f32 0.0, %v876
  %878 = vmatprep.mubr.bf16.mxu0 %v496
  %879 = vmatmul.mubr.bf16.gmra.mxu0 %v361
  %v880 = vpop.f32.mrf.mxu0
  %v881 = vadd.f32 0.0, %v880
  %v882 = vpop.f32.mrf.mxu0
  %v883 = vadd.f32 0.0, %v882
  %v884 = vpop.f32.mrf.mxu0
  %v885 = vadd.f32 0.0, %v884
  %v886 = vpop.f32.mrf.mxu0
  %v887 = vadd.f32 0.0, %v886
  %888 = vmatprep.mubr.bf16.mxu0 %v499
  %889 = vmatmul.mubr.bf16.gmra.mxu0 %v363
  %v890 = vpop.f32.mrf.mxu0
  %v891 = vadd.f32 0.0, %v890
  %v892 = vpop.f32.mrf.mxu0
  %v893 = vadd.f32 0.0, %v892
  %v894 = vpop.f32.mrf.mxu0
  %v895 = vadd.f32 0.0, %v894
  %v896 = vpop.f32.mrf.mxu0
  %v897 = vadd.f32 0.0, %v896
  %898 = vmatprep.mubr.bf16.mxu0 %v502
  %899 = vmatmul.mubr.bf16.gmra.mxu0 %v365
  %v900 = vpop.f32.mrf.mxu0
  %v901 = vadd.f32 0.0, %v900
  %v902 = vpop.f32.mrf.mxu0
  %v903 = vadd.f32 0.0, %v902
  %v904 = vpop.f32.mrf.mxu0
  %v905 = vadd.f32 0.0, %v904
  %v906 = vpop.f32.mrf.mxu0
  %v907 = vadd.f32 0.0, %v906
  %908 = vmatprep.mubr.bf16.mxu0 %v505
  %909 = vmatmul.mubr.bf16.gmra.mxu0 %v367
  %v910 = vpop.f32.mrf.mxu0
  %v911 = vadd.f32 0.0, %v910
  %v912 = vpop.f32.mrf.mxu0
  %v913 = vadd.f32 0.0, %v912
  %v914 = vpop.f32.mrf.mxu0
  %v915 = vadd.f32 0.0, %v914
  %v916 = vpop.f32.mrf.mxu0
  %v917 = vadd.f32 0.0, %v916
  %918 = vmatprep.mubr.bf16.mxu0 %v508
  %919 = vmatmul.mubr.bf16.gmra.mxu0 %v369
  %v920 = vpop.f32.mrf.mxu0
  %v921 = vadd.f32 0.0, %v920
  %v922 = vpop.f32.mrf.mxu0
  %v923 = vadd.f32 0.0, %v922
  %v924 = vpop.f32.mrf.mxu0
  %v925 = vadd.f32 0.0, %v924
  %v926 = vpop.f32.mrf.mxu0
  %v927 = vadd.f32 0.0, %v926
  %928 = vmatprep.mubr.bf16.mxu0 %v511
  %929 = vmatmul.mubr.bf16.gmra.mxu0 %v371
  %v930 = vpop.f32.mrf.mxu0
  %v931 = vadd.f32 0.0, %v930
  %v932 = vpop.f32.mrf.mxu0
  %v933 = vadd.f32 0.0, %v932
  %v934 = vpop.f32.mrf.mxu0
  %v935 = vadd.f32 0.0, %v934
  %v936 = vpop.f32.mrf.mxu0
  %v937 = vadd.f32 0.0, %v936
  %938 = vmatprep.mubr.bf16.mxu0 %v514
  %939 = vmatmul.mubr.bf16.gmra.mxu0 %v373
  %v940 = vpop.f32.mrf.mxu0
  %v941 = vadd.f32 0.0, %v940
  %v942 = vpop.f32.mrf.mxu0
  %v943 = vadd.f32 0.0, %v942
  %v944 = vpop.f32.mrf.mxu0
  %v945 = vadd.f32 0.0, %v944
  %v946 = vpop.f32.mrf.mxu0
  %v947 = vadd.f32 0.0, %v946
  %948 = vdwg.mxu0
  %949 = vst [vmem:[%s3] sm:$0xff] %v551
  %vm950 = vcmask 556032
  %951 = vst.msk [vmem:[%s3 + $0x8] sm:$0xff] %vm950, %v553
  %952 = vst [vmem:[%s3 + $0x10] sm:$0xff] %v555
  %953 = vst.msk [vmem:[%s3 + $0x18] sm:$0xff] %vm950, %v557
  %954 = vst [vmem:[%s3 + $0x20] sm:$0xff] %v561
  %955 = vst.msk [vmem:[%s3 + $0x28] sm:$0xff] %vm950, %v563
  %956 = vst [vmem:[%s3 + $0x30] sm:$0xff] %v565
  %957 = vst.msk [vmem:[%s3 + $0x38] sm:$0xff] %vm950, %v567
  %958 = vst [vmem:[%s3 + $0x40] sm:$0xff] %v571
  %959 = vst.msk [vmem:[%s3 + $0x48] sm:$0xff] %vm950, %v573
  %960 = vst [vmem:[%s3 + $0x50] sm:$0xff] %v575
  %961 = vst.msk [vmem:[%s3 + $0x58] sm:$0xff] %vm950, %v577
  %962 = vst [vmem:[%s3 + $0x60] sm:$0xff] %v581
  %963 = vst.msk [vmem:[%s3 + $0x68] sm:$0xff] %vm950, %v583
  %964 = vst [vmem:[%s3 + $0x70] sm:$0xff] %v585
  %965 = vst.msk [vmem:[%s3 + $0x78] sm:$0xff] %vm950, %v587
  %966 = vst [vmem:[%s3 + $0x80] sm:$0xff] %v591
  %967 = vst.msk [vmem:[%s3 + $0x88] sm:$0xff] %vm950, %v593
  %968 = vst [vmem:[%s3 + $0x90] sm:$0xff] %v595
  %969 = vst.msk [vmem:[%s3 + $0x98] sm:$0xff] %vm950, %v597
  %970 = vst [vmem:[%s3 + $0xa0] sm:$0xff] %v601
  %971 = vst.msk [vmem:[%s3 + $0xa8] sm:$0xff] %vm950, %v603
  %972 = vst [vmem:[%s3 + $0xb0] sm:$0xff] %v605
  %973 = vst.msk [vmem:[%s3 + $0xb8] sm:$0xff] %vm950, %v607
  %974 = vst [vmem:[%s3 + $0xc0] sm:$0xff] %v611
  %975 = vst.msk [vmem:[%s3 + $0xc8] sm:$0xff] %vm950, %v613
  %976 = vst [vmem:[%s3 + $0xd0] sm:$0xff] %v615
  %977 = vst.msk [vmem:[%s3 + $0xd8] sm:$0xff] %vm950, %v617
  %978 = vst [vmem:[%s3 + $0xe0] sm:$0xff] %v621
  %979 = vst.msk [vmem:[%s3 + $0xe8] sm:$0xff] %vm950, %v623
  %980 = vst [vmem:[%s3 + $0xf0] sm:$0xff] %v625
  %981 = vst.msk [vmem:[%s3 + $0xf8] sm:$0xff] %vm950, %v627
  %982 = vst [vmem:[%s3 + $0x100] sm:$0xff] %v631
  %983 = vst.msk [vmem:[%s3 + $0x108] sm:$0xff] %vm950, %v633
  %984 = vst [vmem:[%s3 + $0x110] sm:$0xff] %v635
  %985 = vst.msk [vmem:[%s3 + $0x118] sm:$0xff] %vm950, %v637
  %986 = vst [vmem:[%s3 + $0x120] sm:$0xff] %v641
  %987 = vst.msk [vmem:[%s3 + $0x128] sm:$0xff] %vm950, %v643
  %988 = vst [vmem:[%s3 + $0x130] sm:$0xff] %v645
  %989 = vst.msk [vmem:[%s3 + $0x138] sm:$0xff] %vm950, %v647
  %990 = vst [vmem:[%s3 + $0x140] sm:$0xff] %v651
  %991 = vst.msk [vmem:[%s3 + $0x148] sm:$0xff] %vm950, %v653
  %992 = vst [vmem:[%s3 + $0x150] sm:$0xff] %v655
  %993 = vst.msk [vmem:[%s3 + $0x158] sm:$0xff] %vm950, %v657
  %994 = vst [vmem:[%s3 + $0x160] sm:$0xff] %v661
  %995 = vst.msk [vmem:[%s3 + $0x168] sm:$0xff] %vm950, %v663
  %996 = vst [vmem:[%s3 + $0x170] sm:$0xff] %v665
  %997 = vst.msk [vmem:[%s3 + $0x178] sm:$0xff] %vm950, %v667
  %998 = vst [vmem:[%s3 + $0x180] sm:$0xff] %v671
  %999 = vst.msk [vmem:[%s3 + $0x188] sm:$0xff] %vm950, %v673
  %1000 = vst [vmem:[%s3 + $0x190] sm:$0xff] %v675
  %1001 = vst.msk [vmem:[%s3 + $0x198] sm:$0xff] %vm950, %v677
  %1002 = vst [vmem:[%s3 + $0x1a0] sm:$0xff] %v681
  %1003 = vst.msk [vmem:[%s3 + $0x1a8] sm:$0xff] %vm950, %v683
  %1004 = vst [vmem:[%s3 + $0x1b0] sm:$0xff] %v685
  %1005 = vst.msk [vmem:[%s3 + $0x1b8] sm:$0xff] %vm950, %v687
  %1006 = vst [vmem:[%s3 + $0x1c0] sm:$0xff] %v691
  %1007 = vst.msk [vmem:[%s3 + $0x1c8] sm:$0xff] %vm950, %v693
  %1008 = vst [vmem:[%s3 + $0x1d0] sm:$0xff] %v695
  %1009 = vst.msk [vmem:[%s3 + $0x1d8] sm:$0xff] %vm950, %v697
  %1010 = vst [vmem:[%s3 + $0x1e0] sm:$0xff] %v701
  %1011 = vst.msk [vmem:[%s3 + $0x1e8] sm:$0xff] %vm950, %v703
  %1012 = vst [vmem:[%s3 + $0x1f0] sm:$0xff] %v705
  %1013 = vst.msk [vmem:[%s3 + $0x1f8] sm:$0xff] %vm950, %v707
  %1014 = vst [vmem:[%s3 + $0x200] sm:$0xff] %v711
  %1015 = vst.msk [vmem:[%s3 + $0x208] sm:$0xff] %vm950, %v713
  %1016 = vst [vmem:[%s3 + $0x210] sm:$0xff] %v715
  %1017 = vst.msk [vmem:[%s3 + $0x218] sm:$0xff] %vm950, %v717
  %1018 = vst [vmem:[%s3 + $0x220] sm:$0xff] %v721
  %1019 = vst.msk [vmem:[%s3 + $0x228] sm:$0xff] %vm950, %v723
  %1020 = vst [vmem:[%s3 + $0x230] sm:$0xff] %v725
  %1021 = vst.msk [vmem:[%s3 + $0x238] sm:$0xff] %vm950, %v727
  %1022 = vst [vmem:[%s3 + $0x240] sm:$0xff] %v731
  %1023 = vst.msk [vmem:[%s3 + $0x248] sm:$0xff] %vm950, %v733
  %1024 = vst [vmem:[%s3 + $0x250] sm:$0xff] %v735
  %1025 = vst.msk [vmem:[%s3 + $0x258] sm:$0xff] %vm950, %v737
  %1026 = vst [vmem:[%s3 + $0x260] sm:$0xff] %v741
  %1027 = vst.msk [vmem:[%s3 + $0x268] sm:$0xff] %vm950, %v743
  %1028 = vst [vmem:[%s3 + $0x270] sm:$0xff] %v745
  %1029 = vst.msk [vmem:[%s3 + $0x278] sm:$0xff] %vm950, %v747
  %1030 = vst [vmem:[%s3 + $0x280] sm:$0xff] %v751
  %1031 = vst.msk [vmem:[%s3 + $0x288] sm:$0xff] %vm950, %v753
  %1032 = vst [vmem:[%s3 + $0x290] sm:$0xff] %v755
  %1033 = vst.msk [vmem:[%s3 + $0x298] sm:$0xff] %vm950, %v757
  %1034 = vst [vmem:[%s3 + $0x2a0] sm:$0xff] %v761
  %1035 = vst.msk [vmem:[%s3 + $0x2a8] sm:$0xff] %vm950, %v763
  %1036 = vst [vmem:[%s3 + $0x2b0] sm:$0xff] %v765
  %1037 = vst.msk [vmem:[%s3 + $0x2b8] sm:$0xff] %vm950, %v767
  %1038 = vst [vmem:[%s3 + $0x2c0] sm:$0xff] %v771
  %1039 = vst.msk [vmem:[%s3 + $0x2c8] sm:$0xff] %vm950, %v773
  %1040 = vst [vmem:[%s3 + $0x2d0] sm:$0xff] %v775
  %1041 = vst.msk [vmem:[%s3 + $0x2d8] sm:$0xff] %vm950, %v777
  %1042 = vst [vmem:[%s3 + $0x2e0] sm:$0xff] %v781
  %1043 = vst.msk [vmem:[%s3 + $0x2e8] sm:$0xff] %vm950, %v783
  %1044 = vst [vmem:[%s3 + $0x2f0] sm:$0xff] %v785
  %1045 = vst.msk [vmem:[%s3 + $0x2f8] sm:$0xff] %vm950, %v787
  %1046 = vst [vmem:[%s3 + $0x300] sm:$0xff] %v791
  %1047 = vst.msk [vmem:[%s3 + $0x308] sm:$0xff] %vm950, %v793
  %1048 = vst [vmem:[%s3 + $0x310] sm:$0xff] %v795
  %1049 = vst.msk [vmem:[%s3 + $0x318] sm:$0xff] %vm950, %v797
  %1050 = vst [vmem:[%s3 + $0x320] sm:$0xff] %v801
  %1051 = vst.msk [vmem:[%s3 + $0x328] sm:$0xff] %vm950, %v803
  %1052 = vst [vmem:[%s3 + $0x330] sm:$0xff] %v805
  %1053 = vst.msk [vmem:[%s3 + $0x338] sm:$0xff] %vm950, %v807
  %1054 = vst [vmem:[%s3 + $0x340] sm:$0xff] %v811
  %1055 = vst.msk [vmem:[%s3 + $0x348] sm:$0xff] %vm950, %v813
  %1056 = vst [vmem:[%s3 + $0x350] sm:$0xff] %v815
  %1057 = vst.msk [vmem:[%s3 + $0x358] sm:$0xff] %vm950, %v817
  %1058 = vst [vmem:[%s3 + $0x360] sm:$0xff] %v821
  %1059 = vst.msk [vmem:[%s3 + $0x368] sm:$0xff] %vm950, %v823
  %1060 = vst [vmem:[%s3 + $0x370] sm:$0xff] %v825
  %1061 = vst.msk [vmem:[%s3 + $0x378] sm:$0xff] %vm950, %v827
  %1062 = vst [vmem:[%s3 + $0x380] sm:$0xff] %v831
  %1063 = vst.msk [vmem:[%s3 + $0x388] sm:$0xff] %vm950, %v833
  %1064 = vst [vmem:[%s3 + $0x390] sm:$0xff] %v835
  %1065 = vst.msk [vmem:[%s3 + $0x398] sm:$0xff] %vm950, %v837
  %1066 = vst [vmem:[%s3 + $0x3a0] sm:$0xff] %v841
  %1067 = vst.msk [vmem:[%s3 + $0x3a8] sm:$0xff] %vm950, %v843
  %1068 = vst [vmem:[%s3 + $0x3b0] sm:$0xff] %v845
  %1069 = vst.msk [vmem:[%s3 + $0x3b8] sm:$0xff] %vm950, %v847
  %1070 = vst [vmem:[%s3 + $0x3c0] sm:$0xff] %v851
  %1071 = vst.msk [vmem:[%s3 + $0x3c8] sm:$0xff] %vm950, %v853
  %1072 = vst [vmem:[%s3 + $0x3d0] sm:$0xff] %v855
  %1073 = vst.msk [vmem:[%s3 + $0x3d8] sm:$0xff] %vm950, %v857
  %1074 = vst [vmem:[%s3 + $0x3e0] sm:$0xff] %v861
  %1075 = vst.msk [vmem:[%s3 + $0x3e8] sm:$0xff] %vm950, %v863
  %1076 = vst [vmem:[%s3 + $0x3f0] sm:$0xff] %v865
  %1077 = vst.msk [vmem:[%s3 + $0x3f8] sm:$0xff] %vm950, %v867
  %1078 = vst [vmem:[%s3 + $0x400] sm:$0xff] %v871
  %1079 = vst.msk [vmem:[%s3 + $0x408] sm:$0xff] %vm950, %v873
  %1080 = vst [vmem:[%s3 + $0x410] sm:$0xff] %v875
  %1081 = vst.msk [vmem:[%s3 + $0x418] sm:$0xff] %vm950, %v877
  %1082 = vst [vmem:[%s3 + $0x420] sm:$0xff] %v881
  %1083 = vst.msk [vmem:[%s3 + $0x428] sm:$0xff] %vm950, %v883
  %1084 = vst [vmem:[%s3 + $0x430] sm:$0xff] %v885
  %1085 = vst.msk [vmem:[%s3 + $0x438] sm:$0xff] %vm950, %v887
  %1086 = vst [vmem:[%s3 + $0x440] sm:$0xff] %v891
  %1087 = vst.msk [vmem:[%s3 + $0x448] sm:$0xff] %vm950, %v893
  %1088 = vst [vmem:[%s3 + $0x450] sm:$0xff] %v895
  %1089 = vst.msk [vmem:[%s3 + $0x458] sm:$0xff] %vm950, %v897
  %1090 = vst [vmem:[%s3 + $0x460] sm:$0xff] %v901
  %1091 = vst.msk [vmem:[%s3 + $0x468] sm:$0xff] %vm950, %v903
  %1092 = vst [vmem:[%s3 + $0x470] sm:$0xff] %v905
  %1093 = vst.msk [vmem:[%s3 + $0x478] sm:$0xff] %vm950, %v907
  %1094 = vst [vmem:[%s3 + $0x480] sm:$0xff] %v911
  %1095 = vst.msk [vmem:[%s3 + $0x488] sm:$0xff] %vm950, %v913
  %1096 = vst [vmem:[%s3 + $0x490] sm:$0xff] %v915
  %1097 = vst.msk [vmem:[%s3 + $0x498] sm:$0xff] %vm950, %v917
  %1098 = vst [vmem:[%s3 + $0x4a0] sm:$0xff] %v921
  %1099 = vst.msk [vmem:[%s3 + $0x4a8] sm:$0xff] %vm950, %v923
  %1100 = vst [vmem:[%s3 + $0x4b0] sm:$0xff] %v925
  %1101 = vst.msk [vmem:[%s3 + $0x4b8] sm:$0xff] %vm950, %v927
  %1102 = vst [vmem:[%s3 + $0x4c0] sm:$0xff] %v931
  %1103 = vst.msk [vmem:[%s3 + $0x4c8] sm:$0xff] %vm950, %v933
  %1104 = vst [vmem:[%s3 + $0x4d0] sm:$0xff] %v935
  %1105 = vst.msk [vmem:[%s3 + $0x4d8] sm:$0xff] %vm950, %v937
  %1106 = vst [vmem:[%s3 + $0x4e0] sm:$0xff] %v941
  %1107 = vst.msk [vmem:[%s3 + $0x4e8] sm:$0xff] %vm950, %v943
  %1108 = vst [vmem:[%s3 + $0x4f0] sm:$0xff] %v945
  %1109 = vst.msk [vmem:[%s3 + $0x4f8] sm:$0xff] %vm950, %v947
  // Predicated region
  $region14: #{tpu_custom_call.1} parent=0 // pred_check
    _
  $region15: #{tpu_custom_call.1} parent=0 // pred_check_branch
    %1111 = sbr.rel (0) target = $region17
  $region16: #{tpu_custom_call.1} parent=0 // pred_region
    _
  $region17: #{tpu_custom_call.1} parent=0 // pred_fallthru
    _
  // Predicated region
  $region18: #{tpu_custom_call.1} parent=0 // pred_check
    _
  $region19: #{tpu_custom_call.1} parent=0 // pred_check_branch
    %1113 = sbr.rel (0) target = $region21
  $region20: #{tpu_custom_call.1} parent=0 // pred_region
    _
  $region21: #{tpu_custom_call.1} parent=0 // pred_fallthru
    _

</llo_original>
